<compile_context>
chip_gen: v6e
topology: v6e:2x2x1
jax: 0.10.0
libtpu: 0.0.40
codegen_flags: <defaults>
</compile_context>

<pallas_src>
import functools
import math

import jax
import jax.numpy as jnp
from jax.experimental import pallas as pl
from jax.experimental.pallas import tpu as pltpu


# ------------------------------- Pallas kernel ------------------------------ #

def _embedding_kernel(ids_ref, table_ref, out_ref, *, scale: float):
    # ids_ref:   VMEM (token_tile, 1) int32     -- token ids for this tile
    # table_ref: VMEM (V, D) float32            -- full embedding table (resident)
    # out_ref:   VMEM (token_tile, D) float32   -- output tile
    tile_t, _ = ids_ref.shape
    v, _ = table_ref.shape

    ids = ids_ref[...]                                            # (T, 1) int32

    # One vectorized "gather" for the whole tile: one-hot selection built on the
    # VPU, contracted on the MXU.  No per-token loop, no per-token stores.
    vocab_iota = jax.lax.broadcasted_iota(jnp.int32, (tile_t, v), 1)
    one_hot = (vocab_iota == ids).astype(jnp.bfloat16)            # (T, V) bf16

    # Exact-residual bf16 split of the f32 table: hi = bf16(x), lo = bf16(x-hi).
    # one_hot @ hi + one_hot @ lo reproduces the exact lookup to ~1.5e-5 rel,
    # while both matmuls run in the MXU's native bf16 mode.
    table = table_ref[...]                                        # (V, D) f32
    t_hi = table.astype(jnp.bfloat16)
    t_lo = (table - t_hi.astype(jnp.float32)).astype(jnp.bfloat16)

    gathered = (
        jnp.dot(one_hot, t_hi, preferred_element_type=jnp.float32)
        + jnp.dot(one_hot, t_lo, preferred_element_type=jnp.float32)
    )                                                             # (T, D) f32

    # Fused * sqrt(d_model), single dense store of the whole tile.
    out_ref[...] = (gathered * scale).astype(out_ref.dtype)


# ------------------------------ Python wrapper ------------------------------ #

def embeddings_forward(ids, table, *, token_tile_max: int = 2048):
    """ids: int (B, T); table: (vocab, d_model) float32. Returns (B, T, d_model)."""
    B, T = ids.shape
    V, D = table.shape
    n = B * T
    scale = math.sqrt(D)

    # Large token tiles (multiple of 8 sublanes) amortize per-grid-step overhead;
    # at the demo size (n=16) this is a single un-padded tile, so there is no
    # wrapper-side pad or slice copy.
    token_tile_max = max(8, (token_tile_max // 8) * 8)
    token_tile = min(token_tile_max, max(8, pl.cdiv(n, 8) * 8))
    n_pad = pl.cdiv(n, token_tile) * token_tile
    n_tiles = n_pad // token_tile

    flat_ids = ids.reshape(n).astype(jnp.int32)
    if n_pad != n:
        flat_ids = jnp.pad(flat_ids, (0, n_pad - n))   # padded tokens gather row 0
    ids2d = flat_ids.reshape(n_pad, 1)

    cost = pl.CostEstimate(
        flops=4 * n_pad * V * D,                       # two one-hot matmuls
        transcendentals=0,
        bytes_accessed=n_pad * 4 + V * D * 4 + n_pad * D * 4,
    )

    out = pl.pallas_call(
        functools.partial(_embedding_kernel, scale=scale),
        out_shape=jax.ShapeDtypeStruct((n_pad, D), table.dtype),
        grid=(n_tiles,),
        in_specs=[
            pl.BlockSpec((token_tile, 1), lambda t: (t, 0)),   # ids, pipelined per tile
            pl.BlockSpec((V, D), lambda t: (0, 0)),            # full table, VMEM-resident
        ],
        out_specs=pl.BlockSpec((token_tile, D), lambda t: (t, 0)),
        compiler_params=pltpu.CompilerParams(
            dimension_semantics=("parallel",),                 # shard tiles across TCs (v7x)
            vmem_limit_bytes=32 * 1024 * 1024,
        ),
        cost_estimate=cost,
    )(ids2d, table)

    if n_pad != n:
        out = out[:n]
    return out.reshape(B, T, D)


# --------------------------------- main ------------------------------------- #

if __name__ == "__main__":
    key = jax.random.PRNGKey(0)
    k_tab, k_ids = jax.random.split(key)

    VOCAB, D_MODEL = 512, 32
    B, T = 2, 8

    table = 0.05 * jax.random.normal(k_tab, (VOCAB, D_MODEL), jnp.float32)
    ids = jax.random.randint(k_ids, (B, T), 0, VOCAB, dtype=jnp.int32)

    out = embeddings_forward(ids, table)
    out = jax.block_until_ready(out)

    # Pure-JAX reference mirroring the PyTorch forward: lut(x) * sqrt(d_model).
    ref = table[ids] * math.sqrt(D_MODEL)

    assert out.shape == (B, T, D_MODEL)
    # bf16 hi/lo MXU gather is accurate to ~1.5e-5 relative (values here are O(1)),
    # so 1e-4 tolerances are comfortably tight.
    max_err = float(jnp.max(jnp.abs(out - ref)))
    assert jnp.allclose(out, ref, rtol=1e-4, atol=1e-4), f"mismatch vs reference (max abs err {max_err})"

    print("KERNEL_OK")
</pallas_src>

<mosaic_0001>
module attributes {stable_mosaic.version = 11 : i64} {
  func.func @_embedding_kernel(%arg0: i32, %arg1: memref<16x1xi32, #tpu.memory_space<vmem>>, %arg2: memref<512x32xf32, #tpu.memory_space<vmem>>, %arg3: memref<16x32xf32, #tpu.memory_space<vmem>>) attributes {dimension_semantics = [#tpu.dimension_semantics<parallel>], iteration_bounds = array<i64: 1>, scalar_prefetch = 0 : i64, scratch_operands = 0 : i64, tpu.core_type = #tpu.core_type<tc>, window_params = [{transform_indices = @transform_0, window_bounds = array<i64: 16, 1>}, {pipeline_mode = #tpu.pipeline_mode<synchronous>, transform_indices = @transform_1, window_bounds = array<i64: 512, 32>}, {transform_indices = @transform_2, window_bounds = array<i64: 16, 32>}]} {
    %c0 = arith.constant 0 : index
    %c0_0 = arith.constant 0 : index
    %0 = vector.load %arg1[%c0, %c0_0] : memref<16x1xi32, #tpu.memory_space<vmem>>, vector<16x1xi32>
    %1 = tpu.iota {dimensions = array<i32: 1>} : vector<16x512xi32>
    %2 = vector.broadcast %0 : vector<16x1xi32> to vector<16x512xi32>
    %3 = arith.cmpi eq, %1, %2 : vector<16x512xi32>
    %4 = arith.extui %3 : vector<16x512xi1> to vector<16x512xi32>
    %5 = arith.sitofp %4 : vector<16x512xi32> to vector<16x512xf32>
    %6 = arith.truncf %5 : vector<16x512xf32> to vector<16x512xbf16>
    %c0_1 = arith.constant 0 : index
    %c0_2 = arith.constant 0 : index
    %7 = vector.load %arg2[%c0_1, %c0_2] : memref<512x32xf32, #tpu.memory_space<vmem>>, vector<512x32xf32>
    %8 = arith.truncf %7 : vector<512x32xf32> to vector<512x32xbf16>
    %9 = arith.extf %8 : vector<512x32xbf16> to vector<512x32xf32>
    %10 = arith.subf %7, %9 : vector<512x32xf32>
    %11 = arith.truncf %10 : vector<512x32xf32> to vector<512x32xbf16>
    %cst = arith.constant dense<0.000000e+00> : vector<16x32xf32>
    %12 = tpu.matmul %6, %8, %cst {dimension_numbers = #tpu.dot_dimension_numbers<[1], [0], [0], [1], [0, 0, 1, 1], [], []>} : vector<16x512xbf16>, vector<512x32xbf16>, vector<16x32xf32> -> vector<16x32xf32>
    %cst_3 = arith.constant dense<0.000000e+00> : vector<16x32xf32>
    %13 = tpu.matmul %6, %11, %cst_3 {dimension_numbers = #tpu.dot_dimension_numbers<[1], [0], [0], [1], [0, 0, 1, 1], [], []>} : vector<16x512xbf16>, vector<512x32xbf16>, vector<16x32xf32> -> vector<16x32xf32>
    %14 = arith.addf %12, %13 : vector<16x32xf32>
    %cst_4 = arith.constant 5.65685415 : f32
    %15 = vector.broadcast %cst_4 : f32 to vector<16x32xf32>
    %16 = arith.mulf %14, %15 : vector<16x32xf32>
    %c0_5 = arith.constant 0 : index
    %c0_6 = arith.constant 0 : index
    %17 = vector.load %arg3[%c0_5, %c0_6] : memref<16x32xf32, #tpu.memory_space<vmem>>, vector<16x32xf32>
    tpu.vector_store %arg3[%c0_5, %c0_6], %16 {strides = array<i32>} : memref<16x32xf32, #tpu.memory_space<vmem>>, vector<16x32xf32>,
    return
  }
  func.func @transform_0(%arg0: i32) -> (i32, i32) {
    %c0_i32 = arith.constant 0 : i32
    %c0_i32_0 = arith.constant 0 : i32
    return %arg0, %c0_i32 : i32, i32
  }
  func.func @transform_1(%arg0: i32) -> (i32, i32) {
    %c0_i32 = arith.constant 0 : i32
    %c0_i32_0 = arith.constant 0 : i32
    %c0_i32_1 = arith.constant 0 : i32
    return %c0_i32, %c0_i32_0 : i32, i32
  }
  func.func @transform_2(%arg0: i32) -> (i32, i32) {
    %c0_i32 = arith.constant 0 : i32
    %c0_i32_0 = arith.constant 0 : i32
    return %arg0, %c0_i32 : i32, i32
  }
}

</mosaic_0001>

<llo_original>
// kernel: tpu_custom_call.1
$region0: #{tpu_custom_call.1}
  #allocation0 [shape = 'u32[]', space=smem, size = 0x4, offset = 0x4, fixed_abs, tag = 'smem constant byte address 0x4 - core index']
  #allocation1 [shape = 'u32[144,128]{1,0:T(1,128)}', space=vmem, size = 0x12000, scoped, tag = 'internal scratch']
  %s0 = inlined_call_operand.vmem [shape: s32[16,1], index: 0, kind: input, shape index: {}]
  %s1 = inlined_call_operand.vmem [shape: f32[512,32], index: 1, kind: input, shape index: {}]
  %s2 = inlined_call_operand.hbm [shape: f32[16,32], index: 2, kind: output, shape index: {}]
  %s3 = sld [smem:[#allocation0]]
  $region18: #{tpu_custom_call.1} parent=0
    _
  %s5 = ssub.s32 1, %s3
  %s6 = scalar_select 0, %s5, %s3
  $region1: #{tpu_custom_call.1} parent=0
    #allocation2 [shape = 'u8[8192]{0}', space=vmem, size = 0x2000, scoped, tag = 'output window, operand 0, single buffered']
    #allocation3 [shape = 's32[1]{0}', space=sflag, size = 0x4, scoped, tag = 'scoped memory for tpu_custom_call.1']
    %7 = vsyncpa [#allocation3], 0
    // Predicated region
    $region2: #{tpu_custom_call.1} parent=1 // pred_check
      _
    $region3: #{tpu_custom_call.1} parent=1 // pred_check_branch
      %9 = sbr.rel (0) target = $region5
    $region4: #{tpu_custom_call.1} parent=1 // pred_region
      _
    $region5: #{tpu_custom_call.1} parent=1 // pred_fallthru
      _
    // Predicated region
    $region6: #{tpu_custom_call.1} parent=1 // pred_check
      _
    $region7: #{tpu_custom_call.1} parent=1 // pred_check_branch
      %11 = sbr.rel (0) target = $region9
    $region8: #{tpu_custom_call.1} parent=1 // pred_region
      _
    $region9: #{tpu_custom_call.1} parent=1 // pred_fallthru
      _
    %v13 = vld [vmem:[%s0] sm:$0xff]
    %v14 = vld [vmem:[%s0 + $0x8] sm:$0xff]
    %v15 = vlaneseq
    %v16 = vand.u32 %v15, 127
    %v17 = vadd.s32 %v16, 128
    %v18 = vadd.s32 %v16, 256
    %v19 = vadd.s32 %v16, 384
    %20 = vset.pattern.permute.xlu0 0
    %21 = vperm.xlu0 %20, %v13
    %v22 = vpop.permute.xlu0 %21
    %23 = vset.pattern.permute.xlu0 0
    %24 = vperm.xlu0 %23, %v14
    %v25 = vpop.permute.xlu0 %24
    %vm26 = vcmp.eq.s32.totalorder %v16, %v22
    %vm27 = vcmp.eq.s32.totalorder %v17, %v22
    %vm28 = vcmp.eq.s32.totalorder %v18, %v22
    %vm29 = vcmp.eq.s32.totalorder %v19, %v22
    %vm30 = vcmp.eq.s32.totalorder %v16, %v25
    %vm31 = vcmp.eq.s32.totalorder %v17, %v25
    %vm32 = vcmp.eq.s32.totalorder %v18, %v25
    %vm33 = vcmp.eq.s32.totalorder %v19, %v25
    %v34 = vsel %vm26, 1, 0
    %v35 = vsel %vm27, 1, 0
    %v36 = vsel %vm28, 1, 0
    %v37 = vsel %vm29, 1, 0
    %v38 = vsel %vm30, 1, 0
    %v39 = vsel %vm31, 1, 0
    %v40 = vsel %vm32, 1, 0
    %v41 = vsel %vm33, 1, 0
    %v42 = vcvt.s32.f32 %v34
    %v43 = vcvt.s32.f32 %v35
    %v44 = vcvt.s32.f32 %v36
    %v45 = vcvt.s32.f32 %v37
    %v46 = vcvt.s32.f32 %v38
    %v47 = vcvt.s32.f32 %v39
    %v48 = vcvt.s32.f32 %v40
    %v49 = vcvt.s32.f32 %v41
    %v50 = vpack.c.bf16 %v46, %v42
    %v51 = vpack.c.bf16 %v47, %v43
    %v52 = vpack.c.bf16 %v48, %v44
    %v53 = vpack.c.bf16 %v49, %v45
    %v54 = vld [vmem:[%s1] sm:$0xff]
    %v55 = vld [vmem:[%s1 + $0x8] sm:$0xff]
    %v56 = vld [vmem:[%s1 + $0x10] sm:$0xff]
    %v57 = vld [vmem:[%s1 + $0x18] sm:$0xff]
    %v58 = vld [vmem:[%s1 + $0x20] sm:$0xff]
    %v59 = vld [vmem:[%s1 + $0x28] sm:$0xff]
    %v60 = vld [vmem:[%s1 + $0x30] sm:$0xff]
    %v61 = vld [vmem:[%s1 + $0x38] sm:$0xff]
    %v62 = vld [vmem:[%s1 + $0x40] sm:$0xff]
    %v63 = vld [vmem:[%s1 + $0x48] sm:$0xff]
    %v64 = vld [vmem:[%s1 + $0x50] sm:$0xff]
    %v65 = vld [vmem:[%s1 + $0x58] sm:$0xff]
    %v66 = vld [vmem:[%s1 + $0x60] sm:$0xff]
    %v67 = vld [vmem:[%s1 + $0x68] sm:$0xff]
    %v68 = vld [vmem:[%s1 + $0x70] sm:$0xff]
    %v69 = vld [vmem:[%s1 + $0x78] sm:$0xff]
    %v70 = vld [vmem:[%s1 + $0x80] sm:$0xff]
    %v71 = vld [vmem:[%s1 + $0x88] sm:$0xff]
    %v72 = vld [vmem:[%s1 + $0x90] sm:$0xff]
    %v73 = vld [vmem:[%s1 + $0x98] sm:$0xff]
    %v74 = vld [vmem:[%s1 + $0xa0] sm:$0xff]
    %v75 = vld [vmem:[%s1 + $0xa8] sm:$0xff]
    %v76 = vld [vmem:[%s1 + $0xb0] sm:$0xff]
    %v77 = vld [vmem:[%s1 + $0xb8] sm:$0xff]
    %v78 = vld [vmem:[%s1 + $0xc0] sm:$0xff]
    %v79 = vld [vmem:[%s1 + $0xc8] sm:$0xff]
    %v80 = vld [vmem:[%s1 + $0xd0] sm:$0xff]
    %v81 = vld [vmem:[%s1 + $0xd8] sm:$0xff]
    %v82 = vld [vmem:[%s1 + $0xe0] sm:$0xff]
    %v83 = vld [vmem:[%s1 + $0xe8] sm:$0xff]
    %v84 = vld [vmem:[%s1 + $0xf0] sm:$0xff]
    %v85 = vld [vmem:[%s1 + $0xf8] sm:$0xff]
    %v86 = vld [vmem:[%s1 + $0x100] sm:$0xff]
    %v87 = vld [vmem:[%s1 + $0x108] sm:$0xff]
    %v88 = vld [vmem:[%s1 + $0x110] sm:$0xff]
    %v89 = vld [vmem:[%s1 + $0x118] sm:$0xff]
    %v90 = vld [vmem:[%s1 + $0x120] sm:$0xff]
    %v91 = vld [vmem:[%s1 + $0x128] sm:$0xff]
    %v92 = vld [vmem:[%s1 + $0x130] sm:$0xff]
    %v93 = vld [vmem:[%s1 + $0x138] sm:$0xff]
    %v94 = vld [vmem:[%s1 + $0x140] sm:$0xff]
    %v95 = vld [vmem:[%s1 + $0x148] sm:$0xff]
    %v96 = vld [vmem:[%s1 + $0x150] sm:$0xff]
    %v97 = vld [vmem:[%s1 + $0x158] sm:$0xff]
    %v98 = vld [vmem:[%s1 + $0x160] sm:$0xff]
    %v99 = vld [vmem:[%s1 + $0x168] sm:$0xff]
    %v100 = vld [vmem:[%s1 + $0x170] sm:$0xff]
    %v101 = vld [vmem:[%s1 + $0x178] sm:$0xff]
    %v102 = vld [vmem:[%s1 + $0x180] sm:$0xff]
    %v103 = vld [vmem:[%s1 + $0x188] sm:$0xff]
    %v104 = vld [vmem:[%s1 + $0x190] sm:$0xff]
    %v105 = vld [vmem:[%s1 + $0x198] sm:$0xff]
    %v106 = vld [vmem:[%s1 + $0x1a0] sm:$0xff]
    %v107 = vld [vmem:[%s1 + $0x1a8] sm:$0xff]
    %v108 = vld [vmem:[%s1 + $0x1b0] sm:$0xff]
    %v109 = vld [vmem:[%s1 + $0x1b8] sm:$0xff]
    %v110 = vld [vmem:[%s1 + $0x1c0] sm:$0xff]
    %v111 = vld [vmem:[%s1 + $0x1c8] sm:$0xff]
    %v112 = vld [vmem:[%s1 + $0x1d0] sm:$0xff]
    %v113 = vld [vmem:[%s1 + $0x1d8] sm:$0xff]
    %v114 = vld [vmem:[%s1 + $0x1e0] sm:$0xff]
    %v115 = vld [vmem:[%s1 + $0x1e8] sm:$0xff]
    %v116 = vld [vmem:[%s1 + $0x1f0] sm:$0xff]
    %v117 = vld [vmem:[%s1 + $0x1f8] sm:$0xff]
    %v118 = vpack.c.bf16 %v55, %v54
    %v119 = vpack.c.bf16 %v57, %v56
    %v120 = vpack.c.bf16 %v59, %v58
    %v121 = vpack.c.bf16 %v61, %v60
    %v122 = vpack.c.bf16 %v63, %v62
    %v123 = vpack.c.bf16 %v65, %v64
    %v124 = vpack.c.bf16 %v67, %v66
    %v125 = vpack.c.bf16 %v69, %v68
    %v126 = vpack.c.bf16 %v71, %v70
    %v127 = vpack.c.bf16 %v73, %v72
    %v128 = vpack.c.bf16 %v75, %v74
    %v129 = vpack.c.bf16 %v77, %v76
    %v130 = vpack.c.bf16 %v79, %v78
    %v131 = vpack.c.bf16 %v81, %v80
    %v132 = vpack.c.bf16 %v83, %v82
    %v133 = vpack.c.bf16 %v85, %v84
    %v134 = vpack.c.bf16 %v87, %v86
    %v135 = vpack.c.bf16 %v89, %v88
    %v136 = vpack.c.bf16 %v91, %v90
    %v137 = vpack.c.bf16 %v93, %v92
    %v138 = vpack.c.bf16 %v95, %v94
    %v139 = vpack.c.bf16 %v97, %v96
    %v140 = vpack.c.bf16 %v99, %v98
    %v141 = vpack.c.bf16 %v101, %v100
    %v142 = vpack.c.bf16 %v103, %v102
    %v143 = vpack.c.bf16 %v105, %v104
    %v144 = vpack.c.bf16 %v107, %v106
    %v145 = vpack.c.bf16 %v109, %v108
    %v146 = vpack.c.bf16 %v111, %v110
    %v147 = vpack.c.bf16 %v113, %v112
    %v148 = vpack.c.bf16 %v115, %v114
    %v149 = vpack.c.bf16 %v117, %v116
    %v150 = vunpack.c.l.bf16 %v118
    %v151 = vunpack.c.h.bf16 %v118
    %v152 = vunpack.c.l.bf16 %v119
    %v153 = vunpack.c.h.bf16 %v119
    %v154 = vunpack.c.l.bf16 %v120
    %v155 = vunpack.c.h.bf16 %v120
    %v156 = vunpack.c.l.bf16 %v121
    %v157 = vunpack.c.h.bf16 %v121
    %v158 = vunpack.c.l.bf16 %v122
    %v159 = vunpack.c.h.bf16 %v122
    %v160 = vunpack.c.l.bf16 %v123
    %v161 = vunpack.c.h.bf16 %v123
    %v162 = vunpack.c.l.bf16 %v124
    %v163 = vunpack.c.h.bf16 %v124
    %v164 = vunpack.c.l.bf16 %v125
    %v165 = vunpack.c.h.bf16 %v125
    %v166 = vunpack.c.l.bf16 %v126
    %v167 = vunpack.c.h.bf16 %v126
    %v168 = vunpack.c.l.bf16 %v127
    %v169 = vunpack.c.h.bf16 %v127
    %v170 = vunpack.c.l.bf16 %v128
    %v171 = vunpack.c.h.bf16 %v128
    %v172 = vunpack.c.l.bf16 %v129
    %v173 = vunpack.c.h.bf16 %v129
    %v174 = vunpack.c.l.bf16 %v130
    %v175 = vunpack.c.h.bf16 %v130
    %v176 = vunpack.c.l.bf16 %v131
    %v177 = vunpack.c.h.bf16 %v131
    %v178 = vunpack.c.l.bf16 %v132
    %v179 = vunpack.c.h.bf16 %v132
    %v180 = vunpack.c.l.bf16 %v133
    %v181 = vunpack.c.h.bf16 %v133
    %v182 = vunpack.c.l.bf16 %v134
    %v183 = vunpack.c.h.bf16 %v134
    %v184 = vunpack.c.l.bf16 %v135
    %v185 = vunpack.c.h.bf16 %v135
    %v186 = vunpack.c.l.bf16 %v136
    %v187 = vunpack.c.h.bf16 %v136
    %v188 = vunpack.c.l.bf16 %v137
    %v189 = vunpack.c.h.bf16 %v137
    %v190 = vunpack.c.l.bf16 %v138
    %v191 = vunpack.c.h.bf16 %v138
    %v192 = vunpack.c.l.bf16 %v139
    %v193 = vunpack.c.h.bf16 %v139
    %v194 = vunpack.c.l.bf16 %v140
    %v195 = vunpack.c.h.bf16 %v140
    %v196 = vunpack.c.l.bf16 %v141
    %v197 = vunpack.c.h.bf16 %v141
    %v198 = vunpack.c.l.bf16 %v142
    %v199 = vunpack.c.h.bf16 %v142
    %v200 = vunpack.c.l.bf16 %v143
    %v201 = vunpack.c.h.bf16 %v143
    %v202 = vunpack.c.l.bf16 %v144
    %v203 = vunpack.c.h.bf16 %v144
    %v204 = vunpack.c.l.bf16 %v145
    %v205 = vunpack.c.h.bf16 %v145
    %v206 = vunpack.c.l.bf16 %v146
    %v207 = vunpack.c.h.bf16 %v146
    %v208 = vunpack.c.l.bf16 %v147
    %v209 = vunpack.c.h.bf16 %v147
    %v210 = vunpack.c.l.bf16 %v148
    %v211 = vunpack.c.h.bf16 %v148
    %v212 = vunpack.c.l.bf16 %v149
    %v213 = vunpack.c.h.bf16 %v149
    %v214 = vsub.f32 %v54, %v150
    %v215 = vsub.f32 %v55, %v151
    %v216 = vsub.f32 %v56, %v152
    %v217 = vsub.f32 %v57, %v153
    %v218 = vsub.f32 %v58, %v154
    %v219 = vsub.f32 %v59, %v155
    %v220 = vsub.f32 %v60, %v156
    %v221 = vsub.f32 %v61, %v157
    %v222 = vsub.f32 %v62, %v158
    %v223 = vsub.f32 %v63, %v159
    %v224 = vsub.f32 %v64, %v160
    %v225 = vsub.f32 %v65, %v161
    %v226 = vsub.f32 %v66, %v162
    %v227 = vsub.f32 %v67, %v163
    %v228 = vsub.f32 %v68, %v164
    %v229 = vsub.f32 %v69, %v165
    %v230 = vsub.f32 %v70, %v166
    %v231 = vsub.f32 %v71, %v167
    %v232 = vsub.f32 %v72, %v168
    %v233 = vsub.f32 %v73, %v169
    %v234 = vsub.f32 %v74, %v170
    %v235 = vsub.f32 %v75, %v171
    %v236 = vsub.f32 %v76, %v172
    %v237 = vsub.f32 %v77, %v173
    %v238 = vsub.f32 %v78, %v174
    %v239 = vsub.f32 %v79, %v175
    %v240 = vsub.f32 %v80, %v176
    %v241 = vsub.f32 %v81, %v177
    %v242 = vsub.f32 %v82, %v178
    %v243 = vsub.f32 %v83, %v179
    %v244 = vsub.f32 %v84, %v180
    %v245 = vsub.f32 %v85, %v181
    %v246 = vsub.f32 %v86, %v182
    %v247 = vsub.f32 %v87, %v183
    %v248 = vsub.f32 %v88, %v184
    %v249 = vsub.f32 %v89, %v185
    %v250 = vsub.f32 %v90, %v186
    %v251 = vsub.f32 %v91, %v187
    %v252 = vsub.f32 %v92, %v188
    %v253 = vsub.f32 %v93, %v189
    %v254 = vsub.f32 %v94, %v190
    %v255 = vsub.f32 %v95, %v191
    %v256 = vsub.f32 %v96, %v192
    %v257 = vsub.f32 %v97, %v193
    %v258 = vsub.f32 %v98, %v194
    %v259 = vsub.f32 %v99, %v195
    %v260 = vsub.f32 %v100, %v196
    %v261 = vsub.f32 %v101, %v197
    %v262 = vsub.f32 %v102, %v198
    %v263 = vsub.f32 %v103, %v199
    %v264 = vsub.f32 %v104, %v200
    %v265 = vsub.f32 %v105, %v201
    %v266 = vsub.f32 %v106, %v202
    %v267 = vsub.f32 %v107, %v203
    %v268 = vsub.f32 %v108, %v204
    %v269 = vsub.f32 %v109, %v205
    %v270 = vsub.f32 %v110, %v206
    %v271 = vsub.f32 %v111, %v207
    %v272 = vsub.f32 %v112, %v208
    %v273 = vsub.f32 %v113, %v209
    %v274 = vsub.f32 %v114, %v210
    %v275 = vsub.f32 %v115, %v211
    %v276 = vsub.f32 %v116, %v212
    %v277 = vsub.f32 %v117, %v213
    %v278 = vpack.c.bf16 %v215, %v214
    %v279 = vpack.c.bf16 %v217, %v216
    %v280 = vpack.c.bf16 %v219, %v218
    %v281 = vpack.c.bf16 %v221, %v220
    %v282 = vpack.c.bf16 %v223, %v222
    %v283 = vpack.c.bf16 %v225, %v224
    %v284 = vpack.c.bf16 %v227, %v226
    %v285 = vpack.c.bf16 %v229, %v228
    %v286 = vpack.c.bf16 %v231, %v230
    %v287 = vpack.c.bf16 %v233, %v232
    %v288 = vpack.c.bf16 %v235, %v234
    %v289 = vpack.c.bf16 %v237, %v236
    %v290 = vpack.c.bf16 %v239, %v238
    %v291 = vpack.c.bf16 %v241, %v240
    %v292 = vpack.c.bf16 %v243, %v242
    %v293 = vpack.c.bf16 %v245, %v244
    %v294 = vpack.c.bf16 %v247, %v246
    %v295 = vpack.c.bf16 %v249, %v248
    %v296 = vpack.c.bf16 %v251, %v250
    %v297 = vpack.c.bf16 %v253, %v252
    %v298 = vpack.c.bf16 %v255, %v254
    %v299 = vpack.c.bf16 %v257, %v256
    %v300 = vpack.c.bf16 %v259, %v258
    %v301 = vpack.c.bf16 %v261, %v260
    %v302 = vpack.c.bf16 %v263, %v262
    %v303 = vpack.c.bf16 %v265, %v264
    %v304 = vpack.c.bf16 %v267, %v266
    %v305 = vpack.c.bf16 %v269, %v268
    %v306 = vpack.c.bf16 %v271, %v270
    %v307 = vpack.c.bf16 %v273, %v272
    %v308 = vpack.c.bf16 %v275, %v274
    %v309 = vpack.c.bf16 %v277, %v276
    %310 = vmatprep.subr.bf16.mxu0 0
    %311 = vmatpush1.bf16.msra.mxu0 %v285
    %312 = vmatprep.subr.bf16.mxu0 0
    %313 = vmatpush1.bf16.msra.mxu0 %v284
    %314 = vmatprep.subr.bf16.mxu0 0
    %315 = vmatpush1.bf16.msra.mxu0 %v283
    %316 = vmatprep.subr.bf16.mxu0 0
    %317 = vmatpush1.bf16.msra.mxu0 %v282
    %318 = vmatprep.subr.bf16.mxu0 0
    %319 = vmatpush1.bf16.msra.mxu0 %v281
    %320 = vmatprep.subr.bf16.mxu0 0
    %321 = vmatpush1.bf16.msra.mxu0 %v280
    %322 = vmatprep.subr.bf16.mxu0 0
    %323 = vmatpush1.bf16.msra.mxu0 %v279
    %324 = vmatprep.subr.bf16.mxu0 0
    %325 = vmatpush1.bf16.msra.mxu0 %v278
    %326 = vmatprep.subr.bf16.mxu0 0
    %327 = vmatpush2.bf16.msra.mxu0 %v293
    %328 = vmatprep.subr.bf16.mxu0 0
    %329 = vmatpush2.bf16.msra.mxu0 %v292
    %330 = vmatprep.subr.bf16.mxu0 0
    %331 = vmatpush2.bf16.msra.mxu0 %v291
    %332 = vmatprep.subr.bf16.mxu0 0
    %333 = vmatpush2.bf16.msra.mxu0 %v290
    %334 = vmatprep.subr.bf16.mxu0 0
    %335 = vmatpush2.bf16.msra.mxu0 %v289
    %336 = vmatprep.subr.bf16.mxu0 0
    %337 = vmatpush2.bf16.msra.mxu0 %v288
    %338 = vmatprep.subr.bf16.mxu0 0
    %339 = vmatpush2.bf16.msra.mxu0 %v287
    %340 = vmatprep.subr.bf16.mxu0 0
    %341 = vmatpush2.bf16.msra.mxu0 %v286
    %342 = vmatprep.mubr.bf16.mxu0 %v51
    %343 = vmatmul.mubr.bf16.gmra.mxu0 %v50
    %v344 = vpop.f32.mrf.mxu0
    %v345 = vadd.f32 0.0, %v344
    %v346 = vpop.f32.mrf.mxu0
    %v347 = vpop.f32.mrf.mxu0
    %v348 = vadd.f32 0.0, %v347
    %v349 = vpop.f32.mrf.mxu0
    %350 = vdwg.mxu0
    %351 = vmatprep.subr.bf16.mxu0 0
    %352 = vmatpush1.bf16.msra.mxu0 %v301
    %353 = vmatprep.subr.bf16.mxu0 0
    %354 = vmatpush1.bf16.msra.mxu0 %v300
    %355 = vmatprep.subr.bf16.mxu0 0
    %356 = vmatpush1.bf16.msra.mxu0 %v299
    %357 = vmatprep.subr.bf16.mxu0 0
    %358 = vmatpush1.bf16.msra.mxu0 %v298
    %359 = vmatprep.subr.bf16.mxu0 0
    %360 = vmatpush1.bf16.msra.mxu0 %v297
    %361 = vmatprep.subr.bf16.mxu0 0
    %362 = vmatpush1.bf16.msra.mxu0 %v296
    %363 = vmatprep.subr.bf16.mxu0 0
    %364 = vmatpush1.bf16.msra.mxu0 %v295
    %365 = vmatprep.subr.bf16.mxu0 0
    %366 = vmatpush1.bf16.msra.mxu0 %v294
    %367 = vmatprep.subr.bf16.mxu0 0
    %368 = vmatpush2.bf16.msra.mxu0 %v309
    %369 = vmatprep.subr.bf16.mxu0 0
    %370 = vmatpush2.bf16.msra.mxu0 %v308
    %371 = vmatprep.subr.bf16.mxu0 0
    %372 = vmatpush2.bf16.msra.mxu0 %v307
    %373 = vmatprep.subr.bf16.mxu0 0
    %374 = vmatpush2.bf16.msra.mxu0 %v306
    %375 = vmatprep.subr.bf16.mxu0 0
    %376 = vmatpush2.bf16.msra.mxu0 %v305
    %377 = vmatprep.subr.bf16.mxu0 0
    %378 = vmatpush2.bf16.msra.mxu0 %v304
    %379 = vmatprep.subr.bf16.mxu0 0
    %380 = vmatpush2.bf16.msra.mxu0 %v303
    %381 = vmatprep.subr.bf16.mxu0 0
    %382 = vmatpush2.bf16.msra.mxu0 %v302
    %383 = vmatprep.mubr.bf16.mxu0 %v53
    %384 = vmatmul.mubr.bf16.gmra.mxu0 %v52
    %v385 = vpop.f32.mrf.mxu0
    %v386 = vadd.f32 %v345, %v385
    %v387 = vpop.f32.mrf.mxu0
    %v388 = vpop.f32.mrf.mxu0
    %v389 = vadd.f32 %v348, %v388
    %v390 = vpop.f32.mrf.mxu0
    %391 = vdwg.mxu0
    %392 = vmatprep.subr.bf16.mxu0 0
    %393 = vmatpush1.bf16.msra.mxu0 %v125
    %394 = vmatprep.subr.bf16.mxu0 0
    %395 = vmatpush1.bf16.msra.mxu0 %v124
    %396 = vmatprep.subr.bf16.mxu0 0
    %397 = vmatpush1.bf16.msra.mxu0 %v123
    %398 = vmatprep.subr.bf16.mxu0 0
    %399 = vmatpush1.bf16.msra.mxu0 %v122
    %400 = vmatprep.subr.bf16.mxu0 0
    %401 = vmatpush1.bf16.msra.mxu0 %v121
    %402 = vmatprep.subr.bf16.mxu0 0
    %403 = vmatpush1.bf16.msra.mxu0 %v120
    %404 = vmatprep.subr.bf16.mxu0 0
    %405 = vmatpush1.bf16.msra.mxu0 %v119
    %406 = vmatprep.subr.bf16.mxu0 0
    %407 = vmatpush1.bf16.msra.mxu0 %v118
    %408 = vmatprep.subr.bf16.mxu0 0
    %409 = vmatpush2.bf16.msra.mxu0 %v133
    %410 = vmatprep.subr.bf16.mxu0 0
    %411 = vmatpush2.bf16.msra.mxu0 %v132
    %412 = vmatprep.subr.bf16.mxu0 0
    %413 = vmatpush2.bf16.msra.mxu0 %v131
    %414 = vmatprep.subr.bf16.mxu0 0
    %415 = vmatpush2.bf16.msra.mxu0 %v130
    %416 = vmatprep.subr.bf16.mxu0 0
    %417 = vmatpush2.bf16.msra.mxu0 %v129
    %418 = vmatprep.subr.bf16.mxu0 0
    %419 = vmatpush2.bf16.msra.mxu0 %v128
    %420 = vmatprep.subr.bf16.mxu0 0
    %421 = vmatpush2.bf16.msra.mxu0 %v127
    %422 = vmatprep.subr.bf16.mxu0 0
    %423 = vmatpush2.bf16.msra.mxu0 %v126
    %424 = vmatprep.mubr.bf16.mxu0 %v51
    %425 = vmatmul.mubr.bf16.gmra.mxu0 %v50
    %v426 = vpop.f32.mrf.mxu0
    %v427 = vadd.f32 %v386, %v426
    %v428 = vpop.f32.mrf.mxu0
    %v429 = vpop.f32.mrf.mxu0
    %v430 = vadd.f32 %v389, %v429
    %v431 = vpop.f32.mrf.mxu0
    %432 = vdwg.mxu0
    %433 = vmatprep.subr.bf16.mxu0 0
    %434 = vmatpush1.bf16.msra.mxu0 %v141
    %435 = vmatprep.subr.bf16.mxu0 0
    %436 = vmatpush1.bf16.msra.mxu0 %v140
    %437 = vmatprep.subr.bf16.mxu0 0
    %438 = vmatpush1.bf16.msra.mxu0 %v139
    %439 = vmatprep.subr.bf16.mxu0 0
    %440 = vmatpush1.bf16.msra.mxu0 %v138
    %441 = vmatprep.subr.bf16.mxu0 0
    %442 = vmatpush1.bf16.msra.mxu0 %v137
    %443 = vmatprep.subr.bf16.mxu0 0
    %444 = vmatpush1.bf16.msra.mxu0 %v136
    %445 = vmatprep.subr.bf16.mxu0 0
    %446 = vmatpush1.bf16.msra.mxu0 %v135
    %447 = vmatprep.subr.bf16.mxu0 0
    %448 = vmatpush1.bf16.msra.mxu0 %v134
    %449 = vmatprep.subr.bf16.mxu0 0
    %450 = vmatpush2.bf16.msra.mxu0 %v149
    %451 = vmatprep.subr.bf16.mxu0 0
    %452 = vmatpush2.bf16.msra.mxu0 %v148
    %453 = vmatprep.subr.bf16.mxu0 0
    %454 = vmatpush2.bf16.msra.mxu0 %v147
    %455 = vmatprep.subr.bf16.mxu0 0
    %456 = vmatpush2.bf16.msra.mxu0 %v146
    %457 = vmatprep.subr.bf16.mxu0 0
    %458 = vmatpush2.bf16.msra.mxu0 %v145
    %459 = vmatprep.subr.bf16.mxu0 0
    %460 = vmatpush2.bf16.msra.mxu0 %v144
    %461 = vmatprep.subr.bf16.mxu0 0
    %462 = vmatpush2.bf16.msra.mxu0 %v143
    %463 = vmatprep.subr.bf16.mxu0 0
    %464 = vmatpush2.bf16.msra.mxu0 %v142
    %465 = vmatprep.mubr.bf16.mxu0 %v53
    %466 = vmatmul.mubr.bf16.gmra.mxu0 %v52
    %v467 = vpop.f32.mrf.mxu0
    %v468 = vadd.f32 %v427, %v467
    %v469 = vpop.f32.mrf.mxu0
    %v470 = vpop.f32.mrf.mxu0
    %v471 = vadd.f32 %v430, %v470
    %v472 = vpop.f32.mrf.mxu0
    %473 = vdwg.mxu0
    %v474 = vmul.f32 %v468, 5.656854
    %v475 = vmul.f32 %v471, 5.656854
    %vm476 = vcmask 261120
    %477 = vst.msk [vmem:[#allocation2] sm:$0xff] %vm476, %v474
    %478 = vst.msk [vmem:[#allocation2 + $0x8] sm:$0xff] %vm476, %v475
    // Predicated region
    $region10: #{tpu_custom_call.1} parent=1 // pred_check
      _
    $region11: #{tpu_custom_call.1} parent=1 // pred_check_branch
      %480 = sbr.rel (0) target = $region13
    $region12: #{tpu_custom_call.1} parent=1 // pred_region
      %s482 = ssub.s32 256, 256
      %483 = vsyncadd [#allocation3], %s482
      %s484 = sshll.u32 [#allocation2], 4
      %s485 = int_to_ptr.vmem [resolvable:$true] %s484
      %490 = dma.vmem_to_hbm [thread:$0]  %s485, 256, %s2, [#allocation3], 128, 128, 8
    $region13: #{tpu_custom_call.1} parent=1 // pred_fallthru
      _
    // Predicated region
    $region14: #{tpu_custom_call.1} parent=1 // pred_check
      _
    $region15: #{tpu_custom_call.1} parent=1 // pred_check_branch
      %492 = sbr.rel (0) target = $region17
    $region16: #{tpu_custom_call.1} parent=1 // pred_region
      %493 = dma.done [#allocation3], 256
    $region17: #{tpu_custom_call.1} parent=1 // pred_fallthru
      _
    %494 = vsyncpa [#allocation3], 1

</llo_original>
